<compile_context>
chip_gen: v7x
topology: tpu7x:2x2x1
jax: 0.10.0
libtpu: 0.0.40
codegen_flags: <defaults>
</compile_context>

<pallas_src>
import functools

import jax
import jax.numpy as jnp
from jax import lax
from jax.experimental import pallas as pl
from jax.experimental.pallas import tpu as pltpu

_PAD_SENTINEL = 1.0e17          # padded points end up ~1e34 away (f32-safe)
_OUT_SUB, _OUT_LANE = 8, 128    # lane-dense per-batch output block
_STRIP = 8                      # sublane strip height


def _chamfer_kernel(t_ref, s_ref, o_ref,
                    row_min_ref, col_min_ref, row_acc_ref, col_acc_ref, *,
                    n_true, m_true, grid_n, grid_m, row_w, col_w):
    i = pl.program_id(1)          # N-tile index
    j = pl.program_id(2)          # M-tile index (innermost)
    tN, D = t_ref.shape           # (tN, D)   points on sublanes
    _, tM = s_ref.shape           # (D, tM)   points on lanes
    n_strips = tN // _STRIP

    # ---- per-batch init ------------------------------------------------------
    @pl.when((i == 0) & (j == 0))
    def _():
        row_acc_ref[...] = jnp.zeros_like(row_acc_ref)
        col_acc_ref[...] = jnp.zeros_like(col_acc_ref)

    @pl.when(j == 0)              # new N-tile: reset the row-min carry
    def _():
        row_min_ref[...] = jnp.full_like(row_min_ref, jnp.inf)

    s = s_ref[...].astype(jnp.float32)            # (D, tM), read once per tile

    # ---- strip loop: everything stays in vregs -------------------------------
    def strip_body(k, col_run):
        off = pl.multiple_of(k * _STRIP, _STRIP)
        t_strip = t_ref[pl.ds(off, _STRIP), :].astype(jnp.float32)   # (8, D)
        # d = 0 peeled: init d2 with diff0^2 (no zero-fill, one fewer add).
        diff = t_strip[:, 0:1] - s[0:1, :]
        d2 = diff * diff
        for d in range(1, D):                     # D is tiny (3): unrolled
            diff = t_strip[:, d:d + 1] - s[d:d + 1, :]
            d2 = d2 + diff * diff
        # running row-min (over M) for this strip's 8 rows
        strip_rm = jnp.min(d2, axis=1, keepdims=True)                # (8, 1)
        cur = row_min_ref[pl.ds(off, _STRIP), :]
        row_min_ref[pl.ds(off, _STRIP), :] = jnp.minimum(cur, strip_rm)
        # running col-min kept in 8-sublane form (no sublane reduce here)
        return jnp.minimum(col_run, d2)

    col_run = lax.fori_loop(
        0, n_strips, strip_body,
        jnp.full((_STRIP, tM), jnp.inf, jnp.float32))

    m_off = pl.multiple_of(j * tM, tM)

    # ---- fold this tile's col-min into the per-column carry -------------------
    @pl.when(i == 0)              # first N-tile for this column chunk: overwrite
    def _():
        col_min_ref[:, pl.ds(m_off, tM)] = col_run

    @pl.when(i != 0)
    def _():
        cur = col_min_ref[:, pl.ds(m_off, tM)]
        col_min_ref[:, pl.ds(m_off, tM)] = jnp.minimum(cur, col_run)

    # ---- finalize row direction: min over all M done for this N-tile ----------
    @pl.when(j == grid_m - 1)
    def _():
        row_min = row_min_ref[...]                                   # (tN, 1)
        row_ids = i * tN + lax.broadcasted_iota(jnp.int32, (tN, 1), 0)
        contrib = jnp.where(row_ids < n_true, jnp.sqrt(row_min), 0.0)
        row_acc_ref[...] += jnp.sum(contrib, axis=0, keepdims=True)

    # ---- finalize col direction: min over all N done for this M-chunk ---------
    @pl.when(i == grid_n - 1)
    def _():
        col_min8 = col_min_ref[:, pl.ds(m_off, tM)]                  # (8, tM)
        col_min = jnp.min(col_min8, axis=0, keepdims=True)           # (1, tM)
        col_ids = j * tM + lax.broadcasted_iota(jnp.int32, (1, tM), 1)
        contrib = jnp.where(col_ids < m_true, jnp.sqrt(col_min), 0.0)
        col_acc_ref[...] += jnp.sum(contrib, axis=1, keepdims=True)

    # ---- last grid step for this batch: emit the per-batch loss ---------------
    @pl.when((i == grid_n - 1) & (j == grid_m - 1))
    def _():
        loss = row_acc_ref[...] * row_w + col_acc_ref[...] * col_w   # (1, 1)
        o_ref[...] = jnp.broadcast_to(loss, o_ref.shape).astype(o_ref.dtype)


def _round_up(x, m):
    return ((x + m - 1) // m) * m


def chamfer_distance_loss(template, source, *, scale=1.0, reduction="mean",
                          tile_n=1024, tile_m=1024):
    assert reduction in ("sum", "mean", "none"), "Unknown or invalid reduction"
    assert template.ndim == 3 and source.ndim == 3
    B, N, D = template.shape
    Bs, M, Ds = source.shape
    assert B == Bs and D == Ds

    # Sublane-aligned (x8) N tiles and lane-aligned (x128) M tiles.  User
    # overrides are rounded UP to valid alignment (never silently clamped to
    # an unlowerable shape), then clamped to the padded problem size so toy
    # shapes do not over-allocate.
    tN = min(_round_up(max(int(tile_n), _STRIP), _STRIP), _round_up(N, _STRIP))
    tM = min(_round_up(max(int(tile_m), 128), 128), _round_up(M, 128))
    Np = _round_up(N, tN)
    Mp = _round_up(M, tM)
    grid_n = Np // tN
    grid_m = Mp // tM

    # Lane-dense layouts: template keeps points on the sublane axis ((tN, D)
    # blocks); source is transposed so its point axis lands on the 128 lanes.
    t_in = template
    s_in = jnp.swapaxes(source, 1, 2)                  # (B, D, M)
    if Np != N:
        t_in = jnp.pad(t_in, ((0, 0), (0, Np - N), (0, 0)),
                       constant_values=_PAD_SENTINEL)
    if Mp != M:
        s_in = jnp.pad(s_in, ((0, 0), (0, 0), (0, Mp - M)),
                       constant_values=_PAD_SENTINEL)

    inv_scale = abs(1.0 / float(scale))
    kernel = functools.partial(
        _chamfer_kernel,
        n_true=N, m_true=M, grid_n=grid_n, grid_m=grid_m,
        row_w=0.5 * inv_scale / N, col_w=0.5 * inv_scale / M)

    grid_spec = pltpu.PrefetchScalarGridSpec(
        num_scalar_prefetch=0,
        grid=(B, grid_n, grid_m),
        in_specs=[
            # template tile: block index constant across j -> resident over M
            pl.BlockSpec((None, tN, D), lambda b, i, j: (b, i, 0)),
            # source tile: block index constant across i within a j step
            pl.BlockSpec((None, D, tM), lambda b, i, j: (b, 0, j)),
        ],
        out_specs=pl.BlockSpec((None, _OUT_SUB, _OUT_LANE),
                               lambda b, i, j: (b, 0, 0)),
        scratch_shapes=[
            pltpu.VMEM((tN, 1), jnp.float32),       # row-min carry (across M)
            pltpu.VMEM((_STRIP, Mp), jnp.float32),  # col-min carry, 8-sublane form
            pltpu.VMEM((1, 1), jnp.float32),        # sum_n sqrt(min_m d2)
            pltpu.VMEM((1, 1), jnp.float32),        # sum_m sqrt(min_n d2)
        ],
    )

    itemsize = jnp.dtype(template.dtype).itemsize
    cost = pl.CostEstimate(
        # ~3 VALU ops per (n, m, d) pair (sub, mul, add/min)
        flops=int(3 * D * B * Np * Mp),
        transcendentals=int(B * (Np + Mp)),
        # template block is resident across the j axis -> loaded once per
        # (b, i); source block re-fetched once per (b, i, j-change).
        bytes_accessed=int(itemsize * B * D * (Np + grid_n * Mp)
                           + 4 * B * _OUT_SUB * _OUT_LANE),
    )

    # NOTE(v7x): with B >= 2 the "parallel" batch axis shards across the two
    # TensorCores; for B == 1 a CORE_PARALLEL split of grid_n with privatized
    # col-min scratch would be needed to use both cores.
    out = pl.pallas_call(
        kernel,
        out_shape=jax.ShapeDtypeStruct((B, _OUT_SUB, _OUT_LANE), jnp.float32),
        grid_spec=grid_spec,
        compiler_params=pltpu.CompilerParams(
            dimension_semantics=("parallel", "arbitrary", "arbitrary")),
        cost_estimate=cost,
    )(t_in, s_in)

    per_batch = out[:, 0, 0]                           # (B,)

    if reduction == "none":
        return per_batch
    elif reduction == "mean":
        return jnp.mean(per_batch, axis=0)
    else:  # "sum"
        return jnp.sum(per_batch, axis=0)


def _chamfer_reference(template, source, scale=1.0, reduction="mean"):
    # Pure-JAX reference (mirrors the PyTorch module).
    t = template.astype(jnp.float32) / scale
    s = source.astype(jnp.float32) / scale
    d2 = jnp.sum((t[:, :, None, :] - s[:, None, :, :]) ** 2, axis=-1)
    c01 = jnp.mean(jnp.sqrt(jnp.min(d2, axis=2)), axis=1)
    c10 = jnp.mean(jnp.sqrt(jnp.min(d2, axis=1)), axis=1)
    pb = 0.5 * (c01 + c10)
    if reduction == "none":
        return pb
    return jnp.mean(pb, axis=0) if reduction == "mean" else jnp.sum(pb, axis=0)


if __name__ == "__main__":
    key = jax.random.PRNGKey(0)
    k1, k2 = jax.random.split(key)

    # Small single-tile case (exercises padding/masking in both N and M).
    B, N, M, D = 2, 20, 24, 3
    template = jax.random.normal(k1, (B, N, D), dtype=jnp.float32)
    source = jax.random.normal(k2, (B, M, D), dtype=jnp.float32)
    out = chamfer_distance_loss(template, source, scale=2.0, reduction="mean")
    out = jax.block_until_ready(out)
    ref = _chamfer_reference(template, source, scale=2.0, reduction="mean")
    assert jnp.allclose(out, ref, rtol=1e-4, atol=1e-5), (out, ref)

    # Multi-tile case: several N/M tiles, carried accumulators, ragged edges,
    # and an unaligned tile_m override (rounded up to 128).
    B2, N2, M2 = 2, 150, 300
    t2 = jax.random.normal(k1, (B2, N2, D), dtype=jnp.float32)
    s2 = jax.random.normal(k2, (B2, M2, D), dtype=jnp.float32)
    out2 = chamfer_distance_loss(t2, s2, scale=1.0, reduction="none",
                                 tile_n=64, tile_m=100)
    out2 = jax.block_until_ready(out2)
    ref2 = _chamfer_reference(t2, s2, scale=1.0, reduction="none")
    assert jnp.allclose(out2, ref2, rtol=1e-4, atol=1e-5), (out2, ref2)

    print("KERNEL_OK")
</pallas_src>

<mosaic_0001>
module attributes {stable_mosaic.version = 11 : i64} {
  func.func @_chamfer_kernel(%arg0: i32, %arg1: i32, %arg2: i32, %arg3: memref<1x24x3xf32, #tpu.memory_space<vmem>>, %arg4: memref<1x3x128xf32, #tpu.memory_space<vmem>>, %arg5: memref<1x8x128xf32, #tpu.memory_space<vmem>>, %arg6: memref<24x1xf32, #tpu.memory_space<vmem>>, %arg7: memref<8x128xf32, #tpu.memory_space<vmem>>, %arg8: memref<1x1xf32, #tpu.memory_space<vmem>>, %arg9: memref<1x1xf32, #tpu.memory_space<vmem>>) attributes {dimension_semantics = [#tpu.dimension_semantics<parallel>, #tpu.dimension_semantics<arbitrary>, #tpu.dimension_semantics<arbitrary>], iteration_bounds = array<i64: 2, 1, 1>, scalar_prefetch = 0 : i64, scratch_operands = 4 : i64, tpu.core_type = #tpu.core_type<tc>, window_params = [{transform_indices = @transform_0, window_bounds = array<i64: 1, 24, 3>}, {transform_indices = @transform_1, window_bounds = array<i64: 1, 3, 128>}, {transform_indices = @transform_2, window_bounds = array<i64: 1, 8, 128>}]} {
    %c0_i32 = arith.constant 0 : i32
    %0 = arith.cmpi eq, %arg1, %c0_i32 : i32
    %c0_i32_0 = arith.constant 0 : i32
    %1 = arith.cmpi eq, %arg2, %c0_i32_0 : i32
    %2 = arith.andi %0, %1 : i1
    %3 = arith.extui %2 : i1 to i32
    %c0_i32_1 = arith.constant 0 : i32
    %4 = arith.cmpi ne, %3, %c0_i32_1 : i32
    scf.if %4 {
      %cst_19 = arith.constant 0.000000e+00 : f32
      %32 = vector.broadcast %cst_19 : f32 to vector<1x1xf32>
      %c0_20 = arith.constant 0 : index
      %c0_21 = arith.constant 0 : index
      %33 = vector.load %arg8[%c0_20, %c0_21] : memref<1x1xf32, #tpu.memory_space<vmem>>, vector<1x1xf32>
      tpu.vector_store %arg8[%c0_20, %c0_21], %32 {strides = array<i32>} : memref<1x1xf32, #tpu.memory_space<vmem>>, vector<1x1xf32>,
      %cst_22 = arith.constant 0.000000e+00 : f32
      %34 = vector.broadcast %cst_22 : f32 to vector<1x1xf32>
      %c0_23 = arith.constant 0 : index
      %c0_24 = arith.constant 0 : index
      %35 = vector.load %arg9[%c0_23, %c0_24] : memref<1x1xf32, #tpu.memory_space<vmem>>, vector<1x1xf32>
      tpu.vector_store %arg9[%c0_23, %c0_24], %34 {strides = array<i32>} : memref<1x1xf32, #tpu.memory_space<vmem>>, vector<1x1xf32>,
    } else {
    }
    %c0_i32_2 = arith.constant 0 : i32
    %5 = arith.cmpi eq, %arg2, %c0_i32_2 : i32
    %6 = arith.extui %5 : i1 to i32
    %c0_i32_3 = arith.constant 0 : i32
    %7 = arith.cmpi ne, %6, %c0_i32_3 : i32
    scf.if %7 {
      %cst_19 = arith.constant 0x7F800000 : f32
      %32 = vector.broadcast %cst_19 : f32 to vector<24x1xf32>
      %c0_20 = arith.constant 0 : index
      %c0_21 = arith.constant 0 : index
      %33 = vector.load %arg6[%c0_20, %c0_21] : memref<24x1xf32, #tpu.memory_space<vmem>>, vector<24x1xf32>
      tpu.vector_store %arg6[%c0_20, %c0_21], %32 {strides = array<i32>} : memref<24x1xf32, #tpu.memory_space<vmem>>, vector<24x1xf32>,
    } else {
    }
    %c0 = arith.constant 0 : index
    %c0_4 = arith.constant 0 : index
    %c0_5 = arith.constant 0 : index
    %8 = vector.load %arg4[%c0, %c0_4, %c0_5] : memref<1x3x128xf32, #tpu.memory_space<vmem>>, vector<1x3x128xf32>
    %9 = vector.shape_cast %8 : vector<1x3x128xf32> to vector<3x128xf32>
    %cst = arith.constant 0x7F800000 : f32
    %10 = vector.broadcast %cst : f32 to vector<8x128xf32>
    %c0_i32_6 = arith.constant 0 : i32
    %c3_i32 = arith.constant 3 : i32
    %11 = arith.addi %c0_i32_6, %c3_i32 : i32
    %c1_i32 = arith.constant 1 : i32
    %12 = scf.for %arg10 = %c0_i32_6 to %11 step %c1_i32 iter_args(%arg11 = %10) -> (vector<8x128xf32>)  : i32 {
      %c8_i32 = arith.constant 8 : i32
      %32 = arith.muli %arg10, %c8_i32 : i32
      %33 = tpu.assume_multiple %32, 8 : i32
      %c0_19 = arith.constant 0 : index
      %34 = arith.index_cast %33 : i32 to index
      %c0_20 = arith.constant 0 : index
      %35 = vector.load %arg3[%c0_19, %34, %c0_20] : memref<1x24x3xf32, #tpu.memory_space<vmem>>, vector<1x8x3xf32>
      %36 = vector.shape_cast %35 : vector<1x8x3xf32> to vector<8x3xf32>
      %37 = vector.extract_strided_slice %36 {offsets = [0, 0], sizes = [8, 1], strides = [1, 1]} : vector<8x3xf32> to vector<8x1xf32>
      %38 = vector.extract_strided_slice %9 {offsets = [0, 0], sizes = [1, 128], strides = [1, 1]} : vector<3x128xf32> to vector<1x128xf32>
      %39 = vector.broadcast %37 : vector<8x1xf32> to vector<8x128xf32>
      %40 = vector.broadcast %38 : vector<1x128xf32> to vector<8x128xf32>
      %41 = arith.subf %39, %40 : vector<8x128xf32>
      %42 = arith.mulf %41, %41 : vector<8x128xf32>
      %43 = vector.extract_strided_slice %36 {offsets = [0, 1], sizes = [8, 1], strides = [1, 1]} : vector<8x3xf32> to vector<8x1xf32>
      %44 = vector.extract_strided_slice %9 {offsets = [1, 0], sizes = [1, 128], strides = [1, 1]} : vector<3x128xf32> to vector<1x128xf32>
      %45 = vector.broadcast %43 : vector<8x1xf32> to vector<8x128xf32>
      %46 = vector.broadcast %44 : vector<1x128xf32> to vector<8x128xf32>
      %47 = arith.subf %45, %46 : vector<8x128xf32>
      %48 = arith.mulf %47, %47 : vector<8x128xf32>
      %49 = arith.addf %42, %48 : vector<8x128xf32>
      %50 = vector.extract_strided_slice %36 {offsets = [0, 2], sizes = [8, 1], strides = [1, 1]} : vector<8x3xf32> to vector<8x1xf32>
      %51 = vector.extract_strided_slice %9 {offsets = [2, 0], sizes = [1, 128], strides = [1, 1]} : vector<3x128xf32> to vector<1x128xf32>
      %52 = vector.broadcast %50 : vector<8x1xf32> to vector<8x128xf32>
      %53 = vector.broadcast %51 : vector<1x128xf32> to vector<8x128xf32>
      %54 = arith.subf %52, %53 : vector<8x128xf32>
      %55 = arith.mulf %54, %54 : vector<8x128xf32>
      %56 = arith.addf %49, %55 : vector<8x128xf32>
      %cst_21 = arith.constant dense<0x7F800000> : vector<8xf32>
      %57 = vector.multi_reduction <minimumf>, %56, %cst_21 [1] : vector<8x128xf32> to vector<8xf32>
      %58 = vector.shape_cast %57 : vector<8xf32> to vector<8x1xf32>
      %59 = arith.index_cast %33 : i32 to index
      %c0_22 = arith.constant 0 : index
      %60 = vector.load %arg6[%59, %c0_22] : memref<24x1xf32, #tpu.memory_space<vmem>>, vector<8x1xf32>
      %61 = arith.minimumf %60, %58 : vector<8x1xf32>
      %62 = arith.index_cast %33 : i32 to index
      %c0_23 = arith.constant 0 : index
      %63 = vector.load %arg6[%62, %c0_23] : memref<24x1xf32, #tpu.memory_space<vmem>>, vector<8x1xf32>
      tpu.vector_store %arg6[%62, %c0_23], %61 {strides = array<i32>} : memref<24x1xf32, #tpu.memory_space<vmem>>, vector<8x1xf32>,
      %64 = arith.minimumf %arg11, %56 : vector<8x128xf32>
      scf.yield %64 : vector<8x128xf32>
    }
    %c3_i32_7 = arith.constant 3 : i32
    %c128_i32 = arith.constant 128 : i32
    %13 = arith.muli %arg2, %c128_i32 : i32
    %14 = tpu.assume_multiple %13, 128 : i32
    %c0_i32_8 = arith.constant 0 : i32
    %15 = arith.cmpi eq, %arg1, %c0_i32_8 : i32
    %16 = arith.extui %15 : i1 to i32
    %c0_i32_9 = arith.constant 0 : i32
    %17 = arith.cmpi ne, %16, %c0_i32_9 : i32
    scf.if %17 {
      %c0_19 = arith.constant 0 : index
      %32 = arith.index_cast %14 : i32 to index
      %33 = vector.load %arg7[%c0_19, %32] : memref<8x128xf32, #tpu.memory_space<vmem>>, vector<8x128xf32>
      tpu.vector_store %arg7[%c0_19, %32], %12 {strides = array<i32>} : memref<8x128xf32, #tpu.memory_space<vmem>>, vector<8x128xf32>,
    } else {
    }
    %c0_i32_10 = arith.constant 0 : i32
    %18 = arith.cmpi ne, %arg1, %c0_i32_10 : i32
    %19 = arith.extui %18 : i1 to i32
    %c0_i32_11 = arith.constant 0 : i32
    %20 = arith.cmpi ne, %19, %c0_i32_11 : i32
    scf.if %20 {
      %c0_19 = arith.constant 0 : index
      %32 = arith.index_cast %14 : i32 to index
      %33 = vector.load %arg7[%c0_19, %32] : memref<8x128xf32, #tpu.memory_space<vmem>>, vector<8x128xf32>
      %34 = arith.minimumf %33, %12 : vector<8x128xf32>
      %c0_20 = arith.constant 0 : index
      %35 = arith.index_cast %14 : i32 to index
      %36 = vector.load %arg7[%c0_20, %35] : memref<8x128xf32, #tpu.memory_space<vmem>>, vector<8x128xf32>
      tpu.vector_store %arg7[%c0_20, %35], %34 {strides = array<i32>} : memref<8x128xf32, #tpu.memory_space<vmem>>, vector<8x128xf32>,
    } else {
    }
    %c0_i32_12 = arith.constant 0 : i32
    %21 = arith.cmpi eq, %arg2, %c0_i32_12 : i32
    %22 = arith.extui %21 : i1 to i32
    %c0_i32_13 = arith.constant 0 : i32
    %23 = arith.cmpi ne, %22, %c0_i32_13 : i32
    scf.if %23 {
      %c0_19 = arith.constant 0 : index
      %c0_20 = arith.constant 0 : index
      %32 = vector.load %arg6[%c0_19, %c0_20] : memref<24x1xf32, #tpu.memory_space<vmem>>, vector<24x1xf32>
      %c24_i32 = arith.constant 24 : i32
      %33 = arith.muli %arg1, %c24_i32 : i32
      %34 = tpu.iota {dimensions = array<i32: 0>} : vector<24x1xi32>
      %35 = vector.broadcast %33 : i32 to vector<24x1xi32>
      %36 = arith.addi %35, %34 : vector<24x1xi32>
      %c20_i32 = arith.constant 20 : i32
      %37 = vector.broadcast %c20_i32 : i32 to vector<24x1xi32>
      %38 = arith.cmpi slt, %36, %37 : vector<24x1xi32>
      %39 = math.sqrt %32 : vector<24x1xf32>
      %cst_21 = arith.constant 0.000000e+00 : f32
      %40 = vector.broadcast %cst_21 : f32 to vector<24x1xf32>
      %41 = arith.select %38, %39, %40 : vector<24x1xi1>, vector<24x1xf32>
      %c0_22 = arith.constant 0 : index
      %c0_23 = arith.constant 0 : index
      %42 = vector.load %arg8[%c0_22, %c0_23] : memref<1x1xf32, #tpu.memory_space<vmem>>, vector<1x1xf32>
      %cst_24 = arith.constant dense<0.000000e+00> : vector<1xf32>
      %43 = vector.multi_reduction <add>, %41, %cst_24 [0] : vector<24x1xf32> to vector<1xf32>
      %44 = vector.shape_cast %43 : vector<1xf32> to vector<1x1xf32>
      %45 = arith.addf %42, %44 : vector<1x1xf32>
      %c0_25 = arith.constant 0 : index
      %c0_26 = arith.constant 0 : index
      %46 = vector.load %arg8[%c0_25, %c0_26] : memref<1x1xf32, #tpu.memory_space<vmem>>, vector<1x1xf32>
      tpu.vector_store %arg8[%c0_25, %c0_26], %45 {strides = array<i32>} : memref<1x1xf32, #tpu.memory_space<vmem>>, vector<1x1xf32>,
    } else {
    }
    %c0_i32_14 = arith.constant 0 : i32
    %24 = arith.cmpi eq, %arg1, %c0_i32_14 : i32
    %25 = arith.extui %24 : i1 to i32
    %c0_i32_15 = arith.constant 0 : i32
    %26 = arith.cmpi ne, %25, %c0_i32_15 : i32
    scf.if %26 {
      %c0_19 = arith.constant 0 : index
      %32 = arith.index_cast %14 : i32 to index
      %33 = vector.load %arg7[%c0_19, %32] : memref<8x128xf32, #tpu.memory_space<vmem>>, vector<8x128xf32>
      %cst_20 = arith.constant dense<0x7F800000> : vector<128xf32>
      %34 = vector.multi_reduction <minimumf>, %33, %cst_20 [0] : vector<8x128xf32> to vector<128xf32>
      %35 = vector.shape_cast %34 : vector<128xf32> to vector<1x128xf32>
      %c128_i32_21 = arith.constant 128 : i32
      %36 = arith.muli %arg2, %c128_i32_21 : i32
      %37 = tpu.iota {dimensions = array<i32: 1>} : vector<1x128xi32>
      %38 = vector.broadcast %36 : i32 to vector<1x128xi32>
      %39 = arith.addi %38, %37 : vector<1x128xi32>
      %c24_i32 = arith.constant 24 : i32
      %40 = vector.broadcast %c24_i32 : i32 to vector<1x128xi32>
      %41 = arith.cmpi slt, %39, %40 : vector<1x128xi32>
      %42 = math.sqrt %35 : vector<1x128xf32>
      %cst_22 = arith.constant 0.000000e+00 : f32
      %43 = vector.broadcast %cst_22 : f32 to vector<1x128xf32>
      %44 = arith.select %41, %42, %43 : vector<1x128xi1>, vector<1x128xf32>
      %c0_23 = arith.constant 0 : index
      %c0_24 = arith.constant 0 : index
      %45 = vector.load %arg9[%c0_23, %c0_24] : memref<1x1xf32, #tpu.memory_space<vmem>>, vector<1x1xf32>
      %cst_25 = arith.constant dense<0.000000e+00> : vector<1xf32>
      %46 = vector.multi_reduction <add>, %44, %cst_25 [1] : vector<1x128xf32> to vector<1xf32>
      %47 = vector.shape_cast %46 : vector<1xf32> to vector<1x1xf32>
      %48 = arith.addf %45, %47 : vector<1x1xf32>
      %c0_26 = arith.constant 0 : index
      %c0_27 = arith.constant 0 : index
      %49 = vector.load %arg9[%c0_26, %c0_27] : memref<1x1xf32, #tpu.memory_space<vmem>>, vector<1x1xf32>
      tpu.vector_store %arg9[%c0_26, %c0_27], %48 {strides = array<i32>} : memref<1x1xf32, #tpu.memory_space<vmem>>, vector<1x1xf32>,
    } else {
    }
    %c0_i32_16 = arith.constant 0 : i32
    %27 = arith.cmpi eq, %arg1, %c0_i32_16 : i32
    %c0_i32_17 = arith.constant 0 : i32
    %28 = arith.cmpi eq, %arg2, %c0_i32_17 : i32
    %29 = arith.andi %27, %28 : i1
    %30 = arith.extui %29 : i1 to i32
    %c0_i32_18 = arith.constant 0 : i32
    %31 = arith.cmpi ne, %30, %c0_i32_18 : i32
    scf.if %31 {
      %c0_19 = arith.constant 0 : index
      %c0_20 = arith.constant 0 : index
      %32 = vector.load %arg8[%c0_19, %c0_20] : memref<1x1xf32, #tpu.memory_space<vmem>>, vector<1x1xf32>
      %cst_21 = arith.constant 1.250000e-02 : f32
      %33 = vector.broadcast %cst_21 : f32 to vector<1x1xf32>
      %34 = arith.mulf %32, %33 : vector<1x1xf32>
      %c0_22 = arith.constant 0 : index
      %c0_23 = arith.constant 0 : index
      %35 = vector.load %arg9[%c0_22, %c0_23] : memref<1x1xf32, #tpu.memory_space<vmem>>, vector<1x1xf32>
      %cst_24 = arith.constant 0.010416667 : f32
      %36 = vector.broadcast %cst_24 : f32 to vector<1x1xf32>
      %37 = arith.mulf %35, %36 : vector<1x1xf32>
      %38 = arith.addf %34, %37 : vector<1x1xf32>
      %39 = vector.shape_cast %38 : vector<1x1xf32> to vector<1x1xf32>
      %40 = vector.broadcast %39 : vector<1x1xf32> to vector<8x128xf32>
      %c0_25 = arith.constant 0 : index
      %c0_26 = arith.constant 0 : index
      %c0_27 = arith.constant 0 : index
      %41 = vector.load %arg5[%c0_25, %c0_26, %c0_27] : memref<1x8x128xf32, #tpu.memory_space<vmem>>, vector<1x8x128xf32>
      %42 = vector.shape_cast %41 : vector<1x8x128xf32> to vector<8x128xf32>
      %43 = vector.shape_cast %40 : vector<8x128xf32> to vector<1x8x128xf32>
      tpu.vector_store %arg5[%c0_25, %c0_26, %c0_27], %43 {strides = array<i32>} : memref<1x8x128xf32, #tpu.memory_space<vmem>>, vector<1x8x128xf32>,
    } else {
    }
    return
  }
  func.func @transform_0(%arg0: i32, %arg1: i32, %arg2: i32) -> (i32, i32, i32) {
    %c0_i32 = arith.constant 0 : i32
    %c0_i32_0 = arith.constant 0 : i32
    return %arg0, %arg1, %c0_i32 : i32, i32, i32
  }
  func.func @transform_1(%arg0: i32, %arg1: i32, %arg2: i32) -> (i32, i32, i32) {
    %c0_i32 = arith.constant 0 : i32
    %c0_i32_0 = arith.constant 0 : i32
    return %arg0, %c0_i32, %arg2 : i32, i32, i32
  }
  func.func @transform_2(%arg0: i32, %arg1: i32, %arg2: i32) -> (i32, i32, i32) {
    %c0_i32 = arith.constant 0 : i32
    %c0_i32_0 = arith.constant 0 : i32
    %c0_i32_1 = arith.constant 0 : i32
    return %arg0, %c0_i32, %c0_i32_0 : i32, i32, i32
  }
}

</mosaic_0001>

<llo_original>
// kernel: tpu_custom_call.1
$region0: #{tpu_custom_call.1}
  #allocation0 [shape = 'u32[]', space=smem, size = 0x4, offset = 0x4, fixed_abs, tag = 'smem constant byte address 0x4 - core index']
  #allocation1 [shape = 'u32[144,128]{1,0:T(1,128)}', space=vmem, size = 0x12000, scoped, tag = 'internal scratch']
  #allocation2 [shape = 'f32[24,1]{1,0:T(8,128)}', space=vmem, size = 0x3000, scoped, tag = 'scratch operand']
  #allocation3 [shape = 'f32[8,128]{1,0:T(8,128)}', space=vmem, size = 0x1000, scoped, tag = 'scratch operand']
  #allocation4 [shape = 'f32[1,1]{1,0:T(1,128)}', space=vmem, size = 0x200, scoped, tag = 'scratch operand']
  #allocation5 [shape = 'f32[1,1]{1,0:T(1,128)}', space=vmem, size = 0x200, scoped, tag = 'scratch operand']
  %s0 = inlined_call_operand.vmem [shape: f32[2,24,3], index: 0, kind: input, shape index: {}]
  %s1 = inlined_call_operand.vmem [shape: f32[2,3,128], index: 1, kind: input, shape index: {}]
  %s2 = inlined_call_operand.hbm [shape: f32[2,8,128], index: 2, kind: output, shape index: {}]
  %s3 = sld [smem:[#allocation0]]
  $region76: #{tpu_custom_call.1} parent=0
    _
  %s5 = ssub.s32 1, %s3
  %s6 = scalar_select 0, %s5, %s3
  $region1: #{tpu_custom_call.1} parent=0
    #allocation6 [shape = 'u8[8192]{0}', space=vmem, size = 0x2000, scoped, tag = 'output window, operand 0']
    #allocation7 [shape = 's32[2]{0}', space=sflag, size = 0x8, scoped, tag = 'scoped memory for tpu_custom_call.1']
    %7 = vsyncpa [#allocation7], 0
    %s8 = scalar_lea.sflag [#allocation7], 1
    %9 = vsyncpa %s8, 0
    loop: start=0, step=1, limit=4
    $region2: #{tpu_custom_call.1} parent=1 // loop_pre_header
      _
    $region3: #{tpu_custom_call.1} parent=1 // loop_header
      %s11 = sphi 0, %s15
      %p12 = scmp.ge.s32.totalorder %s11, 4
      %s18 = sphi 0, %s37
      %s19 = sphi 0, %s33
      %s20 = sphi 0, %s29
      %s21 = sphi 0, %s18
      %s22 = sphi 0, %s19
      %s23 = sphi 0, %s20
      %s24 = sphi 0, %s21
      %s25 = sphi 0, %s22
      %s26 = sphi 0, %s23
      %s42 = sphi 0, %s44
      %s45 = sphi 0, %s42
      %s46 = sphi 0, %s45
      %s62 = sphi 0, %s46
      %s70 = sphi 0, %s72
      %s73 = sphi 0, %s70
      %s74 = sphi 0, %s73
      %s90 = sphi 0, %s74
      %s96 = sphi 0, %s98
      %s99 = sphi 0, %s96
      %s100 = sphi 0, %s99
      %s116 = sphi 0, %s100
    $region4: #{tpu_custom_call.1} parent=1 // loop_header_branch
      %14 = sbr.rel (%p12) target = $region8
    $region5: #{tpu_custom_call.1} parent=1 // loop_body
      %s16 = ssub.s32 %s11, 1
      %s17 = ssub.s32 %s11, 2
      %s27 = sadd.s32 1, %s20
      %p28 = scmp.ge.s32.totalorder %s27, 1
      %s29 = scalar_select %p28, 0, %s27
      %s30 = sadd.s32 1, %s19
      %s31 = scalar_select %p28, %s30, %s19
      %p32 = scmp.ge.s32.totalorder %s31, 1
      %s33 = scalar_select %p32, 0, %s31
      %s34 = sadd.s32 1, %s18
      %s35 = scalar_select %p32, %s34, %s18
      %p36 = scmp.ge.s32.totalorder %s35, 2
      %s37 = scalar_select %p36, 0, %s35
      %s38 = ssub.s32 %s18, %s37
      %s39 = ssub.s32 %s19, %s33
      %s40 = sor.u32 %s38, %s39
      %p41 = scmp.eq.s32.totalorder %s40, 0
      %s43 = sadd.s32 %s42, 1
      %s44 = scalar_select %p41, %s42, %s43
      %p47 = pneg %p41
      %p48 = scmp.eq.s32.totalorder %s11, 1
      %p49 = por %p47, %p48
      %p50 = scmp.ne.s32.totalorder %s42, %s45
      %p51 = scmp.eq.s32.totalorder %s11, 0
      %p52 = por %p50, %p51
      %p53 = scmp.ne.s32.totalorder %s42, %s45
      %p54 = scmp.eq.s32.totalorder %s16, 1
      %p55 = por %p53, %p54
      %p56 = scmp.ne.s32.totalorder %s45, %s46
      %p57 = scmp.eq.s32.totalorder %s16, 0
      %p58 = por %p56, %p57
      %p59 = scmp.ne.s32.totalorder %s45, %s46
      %p60 = scmp.eq.s32.totalorder %s17, 1
      %p61 = por %p59, %p60
      %p63 = scmp.ne.s32.totalorder %s46, %s62
      %p64 = scmp.eq.s32.totalorder %s17, 0
      %p65 = por %p63, %p64
      %s66 = ssub.s32 %s18, %s37
      %s67 = ssub.s32 %s20, %s29
      %s68 = sor.u32 %s66, %s67
      %p69 = scmp.eq.s32.totalorder %s68, 0
      %s71 = sadd.s32 %s70, 1
      %s72 = scalar_select %p69, %s70, %s71
      %p75 = pneg %p69
      %p76 = scmp.eq.s32.totalorder %s11, 1
      %p77 = por %p75, %p76
      %p78 = scmp.ne.s32.totalorder %s70, %s73
      %p79 = scmp.eq.s32.totalorder %s11, 0
      %p80 = por %p78, %p79
      %p81 = scmp.ne.s32.totalorder %s70, %s73
      %p82 = scmp.eq.s32.totalorder %s16, 1
      %p83 = por %p81, %p82
      %p84 = scmp.ne.s32.totalorder %s73, %s74
      %p85 = scmp.eq.s32.totalorder %s16, 0
      %p86 = por %p84, %p85
      %p87 = scmp.ne.s32.totalorder %s73, %s74
      %p88 = scmp.eq.s32.totalorder %s17, 1
      %p89 = por %p87, %p88
      %p91 = scmp.ne.s32.totalorder %s74, %s90
      %p92 = scmp.eq.s32.totalorder %s17, 0
      %p93 = por %p91, %p92
      %s94 = ssub.s32 %s18, %s37
      %p95 = scmp.eq.s32.totalorder %s94, 0
      %s97 = sadd.s32 %s96, 1
      %s98 = scalar_select %p95, %s96, %s97
      %p101 = pneg %p95
      %p102 = scmp.eq.s32.totalorder %s11, 1
      %p103 = por %p101, %p102
      %p104 = scmp.ne.s32.totalorder %s96, %s99
      %p105 = scmp.eq.s32.totalorder %s11, 0
      %p106 = por %p104, %p105
      %p107 = scmp.ne.s32.totalorder %s96, %s99
      %p108 = scmp.eq.s32.totalorder %s16, 1
      %p109 = por %p107, %p108
      %p110 = scmp.ne.s32.totalorder %s99, %s100
      %p111 = scmp.eq.s32.totalorder %s16, 0
      %p112 = por %p110, %p111
      %p113 = scmp.ne.s32.totalorder %s99, %s100
      %p114 = scmp.eq.s32.totalorder %s17, 1
      %p115 = por %p113, %p114
      %p117 = scmp.ne.s32.totalorder %s100, %s116
      %p118 = scmp.eq.s32.totalorder %s17, 0
      %p119 = por %p117, %p118
      %p120 = scmp.le.s32.totalorder 1, %s11
      %p121 = scmp.lt.s32.totalorder %s11, 3
      %p122 = pnand %p120, %p121
      %p123 = pneg %p122
      // Predicated region
      $region9: #{tpu_custom_call.1} parent=5 // pred_check
        _
      $region10: #{tpu_custom_call.1} parent=5 // pred_check_branch
        %125 = sbr.rel (%p122) target = $region12
      $region11: #{tpu_custom_call.1} parent=5 // pred_region
        %s126 = ssub.s32 %s11, 1
      $region12: #{tpu_custom_call.1} parent=5 // pred_fallthru
        _
      %p127 = scmp.lt.s32.totalorder %s11, 2
      // Predicated region
      $region13: #{tpu_custom_call.1} parent=5 // pred_check
        %p128 = pneg %p127
      $region14: #{tpu_custom_call.1} parent=5 // pred_check_branch
        %130 = sbr.rel (%p128) target = $region16
      $region15: #{tpu_custom_call.1} parent=5 // pred_region
        // Predicated region
        $region17: #{tpu_custom_call.1} parent=15 // pred_check
          %p131 = pneg %p52
        $region18: #{tpu_custom_call.1} parent=15 // pred_check_branch
          %133 = sbr.rel (%p131) target = $region20
        $region19: #{tpu_custom_call.1} parent=15 // pred_region
          %s134 = smul.u32 3, %s19
          %p135 = scmp.lt.s32.totalorder %s18, 1
          %s136 = scalar_select %p135, %s18, 1
          %p137 = scmp.lt.s32.totalorder %s134, 2
          %s138 = scalar_select %p137, %s134, 2
          %s139 = smul.addr %s136, 3
          %s140 = sadd.s32 %s138, %s139
          %s141 = smul.addr %s140, 8
          %s142 = scalar_lea.vmem %s0, %s141
          %s143 = smul.u32 3, %s19
        $region20: #{tpu_custom_call.1} parent=15 // pred_fallthru
          _
        // Predicated region
        $region21: #{tpu_custom_call.1} parent=15 // pred_check
          %p144 = pneg %p80
        $region22: #{tpu_custom_call.1} parent=15 // pred_check_branch
          %146 = sbr.rel (%p144) target = $region24
        $region23: #{tpu_custom_call.1} parent=15 // pred_region
          %p147 = scmp.lt.s32.totalorder %s18, 1
          %s148 = scalar_select %p147, %s18, 1
          %p149 = scmp.lt.s32.totalorder %s20, 0
          %s150 = scalar_select %p149, %s20, 0
          %s151 = sadd.s32 %s150, %s148
          %s152 = smul.addr %s151, 4
          %s153 = scalar_lea.vmem %s1, %s152
        $region24: #{tpu_custom_call.1} parent=15 // pred_fallthru
          _
      $region16: #{tpu_custom_call.1} parent=5 // pred_fallthru
        _
      %p154 = scmp.le.s32.totalorder 1, %s11
      %p155 = scmp.lt.s32.totalorder %s11, 3
      %p156 = pnand %p154, %p155
      %p157 = pneg %p156
      // Predicated region
      $region25: #{tpu_custom_call.1} parent=5 // pred_check
        _
      $region26: #{tpu_custom_call.1} parent=5 // pred_check_branch
        %159 = sbr.rel (%p156) target = $region28
      $region27: #{tpu_custom_call.1} parent=5 // pred_region
        %s160 = ssub.s32 %s11, 1
        %s161 = smul.u32 3, %s22
        %p162 = scmp.lt.s32.totalorder %s21, 1
        %s163 = scalar_select %p162, %s21, 1
        %p164 = scmp.lt.s32.totalorder %s161, 2
        %s165 = scalar_select %p164, %s161, 2
        %s166 = smul.addr %s163, 3
        %s167 = sadd.s32 %s165, %s166
        %s168 = smul.addr %s167, 8
        %s169 = scalar_lea.vmem %s0, %s168
        %p170 = pneg %p58
        %p171 = pneg %p55
        %p172 = scmp.lt.s32.totalorder %s21, 1
        %s173 = scalar_select %p172, %s21, 1
        %p174 = scmp.lt.s32.totalorder %s23, 0
        %s175 = scalar_select %p174, %s23, 0
        %s176 = sadd.s32 %s175, %s173
        %s177 = smul.addr %s176, 4
        %s178 = scalar_lea.vmem %s1, %s177
        %p179 = pneg %p86
        %p180 = pneg %p83
        %p181 = pneg %p112
        %p182 = pneg %p109
        %s183 = sand.u32 %s99, 1
        %s184 = scalar_lea.sflag [#allocation7], %s183
        %s185 = sand.u32 %s99, 1
        %s186 = smul.addr %s185, 8
        %s187 = scalar_lea.vmem [#allocation6], %s186
        %s188 = smul.u32 3, %s22
        %p189 = scmp.lt.s32.totalorder %s21, 1
        %s190 = scalar_select %p189, %s21, 1
        %p191 = scmp.lt.s32.totalorder %s188, 2
        %s192 = scalar_select %p191, %s188, 2
        %s193 = smul.addr %s190, 3
        %s194 = sadd.s32 %s192, %s193
        %s195 = smul.addr %s194, 8
        %s196 = scalar_lea.vmem %s0, %s195
        %s197 = smul.u32 3, %s22
        %p198 = scmp.lt.s32.totalorder %s21, 1
        %s199 = scalar_select %p198, %s21, 1
        %p200 = scmp.lt.s32.totalorder %s23, 0
        %s201 = scalar_select %p200, %s23, 0
        %s202 = sadd.s32 %s201, %s199
        %s203 = smul.addr %s202, 4
        %s204 = scalar_lea.vmem %s1, %s203
        %p205 = scmp.eq.s32.totalorder %s22, 0
        %p206 = scmp.eq.s32.totalorder %s23, 0
        %p207 = pnand %p205, %p206
        %p208 = pneg %p207
        // Predicated region
        $region29: #{tpu_custom_call.1} parent=27 // pred_check
          _
        $region30: #{tpu_custom_call.1} parent=27 // pred_check_branch
          %210 = sbr.rel (%p207) target = $region32
        $region31: #{tpu_custom_call.1} parent=27 // pred_region
          %vm211 = vcmask 0
          %212 = vst.msk [vmem:[#allocation4] sm:$0x1] %vm211, 0.0
          %213 = vst.msk [vmem:[#allocation5] sm:$0x1] %vm211, 0.0
        $region32: #{tpu_custom_call.1} parent=27 // pred_fallthru
          _
        // Predicated region
        $region33: #{tpu_custom_call.1} parent=27 // pred_check
          %p214 = pneg %p206
        $region34: #{tpu_custom_call.1} parent=27 // pred_check_branch
          %216 = sbr.rel (%p214) target = $region36
        $region35: #{tpu_custom_call.1} parent=27 // pred_region
          %vm217 = vcmask 7168
          %218 = vst.msk [vmem:[#allocation2] sm:$0xff] %vm217, inf
          %219 = vst.msk [vmem:[#allocation2 + $0x8] sm:$0xff] %vm217, inf
          %220 = vst.msk [vmem:[#allocation2 + $0x10] sm:$0xff] %vm217, inf
        $region36: #{tpu_custom_call.1} parent=27 // pred_fallthru
          _
        %v221 = vld [vmem:[%s204] sm:$0x7]
        loop: start=0, step=1, limit=3
        $region37: #{tpu_custom_call.1} parent=27 // loop_pre_header
          _
        $region38: #{tpu_custom_call.1} parent=27 // loop_header
          %s223 = sphi 0, %s227
          %p224 = scmp.ge.s32.totalorder %s223, 3
          %v228 = vphi inf, %v272
        $region39: #{tpu_custom_call.1} parent=27 // loop_header_branch
          %226 = sbr.rel (%p224) target = $region43
        $region40: #{tpu_custom_call.1} parent=27 // loop_body
          %s229 = smul.u32 %s223, 8
          %s230 = scalar_lea.vmem %s196, %s229
          %v231 = vld [vmem:[%s230] sm:$0xff]
          %233 = vset.pattern.permute.xlu0 0
          %234 = vperm.xlu0 %233, %v231
          %v235 = vpop.permute.xlu0 %234
          %v237 = vlaneseq
          %v238 = vshrl.u32 %v237, 7
          %v239 = vsub.s32 0, %v238
          %v240 = vrot.slane %v221, %v239
          %v241 = vsub.f32 %v235, %v240
          %v242 = vmul.f32 %v241, %v241
          %243 = vset.pattern.permute.xlu0 1
          %244 = vperm.xlu0 %243, %v231
          %v245 = vpop.permute.xlu0 %244
          %v247 = vlaneseq
          %v248 = vshrl.u32 %v247, 7
          %v249 = vsub.s32 1, %v248
          %v250 = vrot.slane %v221, %v249
          %v251 = vsub.f32 %v245, %v250
          %v252 = vmul.f32 %v251, %v251
          %v253 = vadd.f32 %v242, %v252
          %254 = vset.pattern.permute.xlu0 2
          %255 = vperm.xlu0 %254, %v231
          %v256 = vpop.permute.xlu0 %255
          %v258 = vlaneseq
          %v259 = vshrl.u32 %v258, 7
          %v260 = vsub.s32 2, %v259
          %v261 = vrot.slane %v221, %v260
          %v262 = vsub.f32 %v256, %v261
          %v263 = vmul.f32 %v262, %v262
          %v264 = vadd.f32 %v253, %v263
          %265 = vmin.xlane.f32.xlu0 %v264
          %v266 = vpop.xlane.xlu0 %265
          %s267 = scalar_lea.vmem [#allocation2], %s229
          %v268 = vld [vmem:[%s267] sm:$0xff]
          %v269 = vmin.f32 %v268, %v266
          %vm270 = vcmask 7168
          %271 = vst.msk [vmem:[%s267] sm:$0xff] %vm270, %v269
          %v272 = vmin.f32 %v228, %v264
        $region41: #{tpu_custom_call.1} parent=27 // loop_footer
          %s227 = sadd.s32 1, %s223
        $region42: #{tpu_custom_call.1} parent=27 // loop_footer_branch
          %222 = sbr.rel target = $region38
        $region43: #{tpu_custom_call.1} parent=27 // loop_exit
          _
        %s273 = smul.u32 %s23, 128
        // Predicated region
        $region44: #{tpu_custom_call.1} parent=27 // pred_check
          %p274 = pneg %p205
        $region45: #{tpu_custom_call.1} parent=27 // pred_check_branch
          %276 = sbr.rel (%p274) target = $region47
        $region46: #{tpu_custom_call.1} parent=27 // pred_region
          %s277 = sshra.s32 %s273, 7
          %s278 = sand.u32 %s273, 127
          %s279 = scalar_lea.vmem [#allocation3], %s277
          %280 = vst [vmem:[%s279] sm:$0xff] %v228
        $region47: #{tpu_custom_call.1} parent=27 // pred_fallthru
          _
        %p281 = scmp.ne.s32.totalorder %s22, 0
        // Predicated region
        $region48: #{tpu_custom_call.1} parent=27 // pred_check
          %p282 = pneg %p281
        $region49: #{tpu_custom_call.1} parent=27 // pred_check_branch
          %284 = sbr.rel (%p282) target = $region51
        $region50: #{tpu_custom_call.1} parent=27 // pred_region
          %s285 = sshra.s32 %s273, 7
          %s286 = sand.u32 %s273, 127
          %s287 = scalar_lea.vmem [#allocation3], %s285
          %v288 = vld [vmem:[%s287] sm:$0xff]
          %v289 = vmin.f32 %v288, %v228
          %290 = vst [vmem:[%s287] sm:$0xff] %v289
        $region51: #{tpu_custom_call.1} parent=27 // pred_fallthru
          _
        // Predicated region
        $region52: #{tpu_custom_call.1} parent=27 // pred_check
          %p291 = pneg %p206
        $region53: #{tpu_custom_call.1} parent=27 // pred_check_branch
          %293 = sbr.rel (%p291) target = $region55
        $region54: #{tpu_custom_call.1} parent=27 // pred_region
          %v294 = vld [vmem:[#allocation2] sm:$0xff]
          %v295 = vld [vmem:[#allocation2 + $0x8] sm:$0xff]
          %v296 = vld [vmem:[#allocation2 + $0x10] sm:$0xff]
          %s297 = smul.u32 %s22, 24
          %v298 = vlaneseq
          %v299 = vshrl.u32 %v298, 7
          %v300 = vadd.s32 %v299, 8
          %v301 = vadd.s32 %v299, 16
          %v302 = vstv %s297
          %v303 = vadd.s32 %v302, %v299
          %v304 = vadd.s32 %v302, %v300
          %v305 = vadd.s32 %v302, %v301
          %vm306 = vcmp.lt.s32.totalorder %v303, 20
          %vm307 = vcmp.lt.s32.totalorder %v304, 20
          %vm308 = vcmp.lt.s32.totalorder %v305, 20
          %v309 = vrsqrt.pop %v294
          %v310 = vmul.f32 %v294, %v309
          %vm311 = vcmp.eq.f32.partialorder %v294, inf
          %v312 = vsel %vm311, %v294, %v310
          %vm313 = vcmp.eq.f32.partialorder %v294, 0.0
          %v314 = vand.u32 %v294, 2147483648
          %v315 = vsel %vm313, %v314, %v312
          %v316 = vrsqrt.pop %v295
          %v317 = vmul.f32 %v295, %v316
          %vm318 = vcmp.eq.f32.partialorder %v295, inf
          %v319 = vsel %vm318, %v295, %v317
          %vm320 = vcmp.eq.f32.partialorder %v295, 0.0
          %v321 = vand.u32 %v295, 2147483648
          %v322 = vsel %vm320, %v321, %v319
          %v323 = vrsqrt.pop %v296
          %v324 = vmul.f32 %v296, %v323
          %vm325 = vcmp.eq.f32.partialorder %v296, inf
          %v326 = vsel %vm325, %v296, %v324
          %vm327 = vcmp.eq.f32.partialorder %v296, 0.0
          %v328 = vand.u32 %v296, 2147483648
          %v329 = vsel %vm327, %v328, %v326
          %v330 = vsel %vm306, %v315, 0.0
          %v331 = vsel %vm307, %v322, 0.0
          %v332 = vsel %vm308, %v329, 0.0
          %v333 = vld [vmem:[#allocation4] sm:$0x1]
          %vm334 = vcmask 7168
          %v335 = vsel %vm334, %v330, 0.0
          %v336 = vsel %vm334, %v331, 0.0
          %v337 = vadd.f32 %v335, %v336
          %v338 = vsel %vm334, %v332, 0.0
          %v339 = vadd.f32 %v337, %v338
          %v340 = vrot.slane %v339, 4
          %v341 = vadd.f32 %v339, %v340
          %v342 = vrot.slane %v341, 2
          %v343 = vadd.f32 %v341, %v342
          %v344 = vrot.slane %v343, 1
          %v345 = vadd.f32 %v343, %v344
          %v346 = vadd.f32 %v333, %v345
          %vm347 = vcmask 0
          %348 = vst.msk [vmem:[#allocation4] sm:$0x1] %vm347, %v346
        $region55: #{tpu_custom_call.1} parent=27 // pred_fallthru
          _
        // Predicated region
        $region56: #{tpu_custom_call.1} parent=27 // pred_check
          %p349 = pneg %p205
        $region57: #{tpu_custom_call.1} parent=27 // pred_check_branch
          %351 = sbr.rel (%p349) target = $region59
        $region58: #{tpu_custom_call.1} parent=27 // pred_region
          %s352 = sshra.s32 %s273, 7
          %s353 = sand.u32 %s273, 127
          %s354 = scalar_lea.vmem [#allocation3], %s352
          %v355 = vld [vmem:[%s354] sm:$0xff]
          %v356 = vrot.slane %v355, 4
          %v357 = vmin.f32 %v355, %v356
          %v358 = vrot.slane %v357, 2
          %v359 = vmin.f32 %v357, %v358
          %v360 = vrot.slane %v359, 1
          %v361 = vmin.f32 %v359, %v360
          %v362 = vlaneseq
          %v363 = vand.u32 %v362, 127
          %v364 = vstv %s273
          %v365 = vadd.s32 %v364, %v363
          %vm366 = vcmp.lt.s32.totalorder %v365, 24
          %v367 = vrsqrt.pop %v361
          %v368 = vmul.f32 %v361, %v367
          %vm369 = vcmp.eq.f32.partialorder %v361, inf
          %v370 = vsel %vm369, %v361, %v368
          %vm371 = vcmp.eq.f32.partialorder %v361, 0.0
          %v372 = vand.u32 %v361, 2147483648
          %v373 = vsel %vm371, %v372, %v370
          %v374 = vsel %vm366, %v373, 0.0
          %v375 = vld [vmem:[#allocation5] sm:$0x1]
          %376 = vadd.xlane.f32.xlu0 %v374
          %v377 = vpop.xlane.xlu0 %376
          %v378 = vadd.f32 %v375, %v377
          %vm379 = vcmask 0
          %380 = vst.msk [vmem:[#allocation5] sm:$0x1] %vm379, %v378
        $region59: #{tpu_custom_call.1} parent=27 // pred_fallthru
          _
        // Predicated region
        $region60: #{tpu_custom_call.1} parent=27 // pred_check
          _
        $region61: #{tpu_custom_call.1} parent=27 // pred_check_branch
          %382 = sbr.rel (%p207) target = $region63
        $region62: #{tpu_custom_call.1} parent=27 // pred_region
          %v383 = vld [vmem:[#allocation4] sm:$0x1]
          %v384 = vmul.f32 %v383, 0.0125
          %v385 = vld [vmem:[#allocation5] sm:$0x1]
          %v386 = vmul.f32 %v385, 0.010416667
          %v387 = vadd.f32 %v384, %v386
          %v389 = vlaneseq
          %v390 = vshrl.u32 %v389, 7
          %v391 = vsub.s32 0, %v390
          %v392 = vrot.slane %v387, %v391
          %393 = vset.pattern.permute.xlu0 0
          %394 = vperm.xlu0 %393, %v392
          %v395 = vpop.permute.xlu0 %394
          %397 = vst [vmem:[%s187] sm:$0xff] %v395
        $region63: #{tpu_custom_call.1} parent=27 // pred_fallthru
          _
        %s398 = sand.u32 %s99, 1
        %s399 = scalar_lea.sflag [#allocation7], %s398
        %s400 = sand.u32 %s99, 1
        %s401 = smul.addr %s400, 8
        %s402 = scalar_lea.vmem [#allocation6], %s401
        // Predicated region
        $region64: #{tpu_custom_call.1} parent=27 // pred_check
          %p403 = pneg %p109
        $region65: #{tpu_custom_call.1} parent=27 // pred_check_branch
          %405 = sbr.rel (%p403) target = $region67
        $region66: #{tpu_custom_call.1} parent=27 // pred_region
          %s407 = ssub.s32 128, 128
          %408 = vsyncadd %s399, %s407
          %s409 = smul.addr %s21, 128
          %s410 = scalar_lea.hbm %s2, %s409
          %s412 = sshll.u32 %s402, 4
          %s413 = int_to_ptr.vmem [resolvable:$true] %s412
          %415 = dma.vmem_to_hbm [thread:$0]  %s413, 128, %s410, %s399
        $region67: #{tpu_custom_call.1} parent=27 // pred_fallthru
          _
      $region28: #{tpu_custom_call.1} parent=5 // pred_fallthru
        _
      %p416 = scmp.le.s32.totalorder 2, %s11
      // Predicated region
      $region68: #{tpu_custom_call.1} parent=5 // pred_check
        %p417 = pneg %p416
      $region69: #{tpu_custom_call.1} parent=5 // pred_check_branch
        %419 = sbr.rel (%p417) target = $region71
      $region70: #{tpu_custom_call.1} parent=5 // pred_region
        %s420 = ssub.s32 %s11, 2
        // Predicated region
        $region72: #{tpu_custom_call.1} parent=70 // pred_check
          %p421 = pneg %p115
        $region73: #{tpu_custom_call.1} parent=70 // pred_check_branch
          %423 = sbr.rel (%p421) target = $region75
        $region74: #{tpu_custom_call.1} parent=70 // pred_region
          %s424 = sand.u32 %s100, 1
          %s425 = scalar_lea.sflag [#allocation7], %s424
          %s426 = sand.u32 %s100, 1
          %s427 = smul.addr %s426, 8
          %s428 = scalar_lea.vmem [#allocation6], %s427
          %429 = dma.done %s425, 128
        $region75: #{tpu_custom_call.1} parent=70 // pred_fallthru
          _
      $region71: #{tpu_custom_call.1} parent=5 // pred_fallthru
        _
    $region6: #{tpu_custom_call.1} parent=1 // loop_footer
      %s15 = sadd.s32 1, %s11
    $region7: #{tpu_custom_call.1} parent=1 // loop_footer_branch
      %10 = sbr.rel target = $region3
    $region8: #{tpu_custom_call.1} parent=1 // loop_exit
      _
    %430 = vsyncpa [#allocation7], 1
    %s431 = scalar_lea.sflag [#allocation7], 1
    %432 = vsyncpa %s431, 1

</llo_original>
